<compile_context>
chip_gen: v5e
topology: v5e:2x2
jax: 0.10.0
libtpu: 0.0.40
codegen_flags: <defaults>
</compile_context>

<pallas_src>
import jax
import jax.numpy as jnp
from jax.experimental import pallas as pl
from jax.experimental.pallas import tpu as pltpu


def _round_up(n, m):
    return ((n + m - 1) // m) * m


def _vertical_kernel(x_ref, w1_ref, w2_ref, w3_ref, out_ref):
    # x_ref:  (tb, 12)   = [inputA (5) | inputB (6) | ones (1)]
    # w1_ref: (12, 65)   bottom layers (block-diag) + biases + ones passthrough
    # w2_ref: (65, 33)   interactive layers (block-diag) + biases + ones passthru
    # w3_ref: (33, 96)   top layer + bias, zero-padded to 96 lanes
    # out_ref:(tb, 128)  lanes 0:32 = PartyA_output, lanes 32:34 = output
    x = x_ref[...]

    # bottom_layerA / bottom_layerB + ReLU (fused block-diagonal matmul)
    h1 = jnp.maximum(
        jnp.dot(x, w1_ref[...], preferred_element_type=jnp.float32), 0.0
    )  # (tb, 65): [pA | pB | 1]

    # interactive_layerA / interactive_layerB + ReLU (fused)
    h2 = jnp.maximum(
        jnp.dot(h1, w2_ref[...], preferred_element_type=jnp.float32), 0.0
    )  # (tb, 33): [relu(iA) | relu(iB) | 1]

    # top_layer (bias folded in via the carried ones lane), padded to 96 lanes
    top = jnp.dot(h2, w3_ref[...], preferred_element_type=jnp.float32)  # (tb, 96)

    # Lane-dense 128-wide output slab: [pA (32) | top (96, real data in 0:2)]
    slab = jnp.concatenate([h1[:, 0:32], top], axis=1)  # (tb, 128)
    out_ref[...] = slab.astype(out_ref.dtype)


def purchase_vertical_forward(inputA, inputB, params, *, tb=1024):
    """Fused forward pass.

    inputA: (B, 5) float32, inputB: (B, 6) float32.
    Returns (PartyA_output (B, 32), output (B, 2)) — same as the PyTorch module.
    """
    B = inputA.shape[0]
    (wA, bA, wB, bB, wIA, bIA, wIB, bIB, wTop, bTop) = params

    f32 = jnp.float32

    # --- Pack weights/biases into three block-diagonal matrices ------------
    # W1: (12, 65) — rows 0:5 inputA, 5:11 inputB, 11 bias/ones row.
    W1 = jnp.zeros((12, 65), f32)
    W1 = W1.at[0:5, 0:32].set(wA.T.astype(f32))
    W1 = W1.at[5:11, 32:64].set(wB.T.astype(f32))
    W1 = W1.at[11, 0:32].set(bA.astype(f32))
    W1 = W1.at[11, 32:64].set(bB.astype(f32))
    W1 = W1.at[11, 64].set(1.0)

    # W2: (65, 33) — rows 0:32 from pA, 32:64 from pB, 64 bias/ones row.
    W2 = jnp.zeros((65, 33), f32)
    W2 = W2.at[0:32, 0:16].set(wIA.T.astype(f32))
    W2 = W2.at[32:64, 16:32].set(wIB.T.astype(f32))
    W2 = W2.at[64, 0:16].set(bIA.astype(f32))
    W2 = W2.at[64, 16:32].set(bIB.astype(f32))
    W2 = W2.at[64, 32].set(1.0)

    # W3: (33, 96) — rows 0:32 top weight (cat order [iA|iB]), row 32 bias.
    W3 = jnp.zeros((33, 96), f32)
    W3 = W3.at[0:32, 0:2].set(wTop.T.astype(f32))
    W3 = W3.at[32, 0:2].set(bTop.astype(f32))

    # --- Augmented, batch-padded input --------------------------------------
    ones = jnp.ones((B, 1), f32)
    x_aug = jnp.concatenate(
        [inputA.astype(f32), inputB.astype(f32), ones], axis=1
    )  # (B, 12)

    tb_eff = _round_up(max(8, min(tb, _round_up(B, 8))), 8)
    Bp = _round_up(B, tb_eff)
    if Bp != B:
        x_aug = jnp.pad(x_aug, ((0, Bp - B), (0, 0)))

    grid = (Bp // tb_eff,)

    slab = pl.pallas_call(
        _vertical_kernel,
        out_shape=jax.ShapeDtypeStruct((Bp, 128), f32),
        grid_spec=pltpu.PrefetchScalarGridSpec(
            num_scalar_prefetch=0,
            grid=grid,
            in_specs=[
                pl.BlockSpec((tb_eff, 12), lambda i: (i, 0)),   # augmented input
                pl.BlockSpec((12, 65), lambda i: (0, 0)),       # W1
                pl.BlockSpec((65, 33), lambda i: (0, 0)),       # W2
                pl.BlockSpec((33, 96), lambda i: (0, 0)),       # W3
            ],
            out_specs=pl.BlockSpec((tb_eff, 128), lambda i: (i, 0)),
        ),
        compiler_params=pltpu.CompilerParams(
            dimension_semantics=("parallel",)
        ),
    )(x_aug, W1, W2, W3)

    partyA_out = slab[:B, 0:32]
    out = slab[:B, 32:34]
    return partyA_out, out


def init_params(key):
    """Deterministic init mimicking PyTorch nn.Linear default:
    U(-1/sqrt(fan_in), 1/sqrt(fan_in)) for both weight and bias."""
    def linear(key, out_f, in_f):
        kw, kb = jax.random.split(key)
        bound = 1.0 / jnp.sqrt(jnp.float32(in_f))
        w = jax.random.uniform(kw, (out_f, in_f), jnp.float32, -bound, bound)
        b = jax.random.uniform(kb, (out_f,), jnp.float32, -bound, bound)
        return w, b

    keys = jax.random.split(key, 5)
    wA, bA = linear(keys[0], 32, 5)       # bottom_layerA
    wB, bB = linear(keys[1], 32, 6)       # bottom_layerB
    wIA, bIA = linear(keys[2], 16, 32)    # interactive_layerA
    wIB, bIB = linear(keys[3], 16, 32)    # interactive_layerB
    wTop, bTop = linear(keys[4], 2, 32)   # top_layer
    return (wA, bA, wB, bB, wIA, bIA, wIB, bIB, wTop, bTop)


def reference_forward(inputA, inputB, params):
    """Pure-JAX reference matching the PyTorch forward exactly."""
    (wA, bA, wB, bB, wIA, bIA, wIB, bIB, wTop, bTop) = params
    pA = jnp.maximum(inputA @ wA.T + bA, 0.0)
    pB = jnp.maximum(inputB @ wB.T + bB, 0.0)
    iA = pA @ wIA.T + bIA
    iB = pB @ wIB.T + bIB
    inter = jnp.maximum(jnp.concatenate([iA, iB], axis=1), 0.0)
    out = inter @ wTop.T + bTop
    return pA, out


if __name__ == "__main__":
    key = jax.random.PRNGKey(0)
    kp, ka, kb = jax.random.split(key, 3)
    params = init_params(kp)

    # Small test (single grid step, tile clamped to the batch).
    B = 16
    inputA = jax.random.normal(ka, (B, 5), jnp.float32)
    inputB = jax.random.normal(kb, (B, 6), jnp.float32)

    partyA_out, out = purchase_vertical_forward(inputA, inputB, params)
    partyA_out = jax.block_until_ready(partyA_out)
    out = jax.block_until_ready(out)

    ref_pA, ref_out = reference_forward(inputA, inputB, params)
    assert partyA_out.shape == (B, 32) and out.shape == (B, 2)
    assert jnp.allclose(partyA_out, ref_pA, atol=1e-5, rtol=1e-5)
    assert jnp.allclose(out, ref_out, atol=1e-5, rtol=1e-5)

    # Second test: non-multiple batch with a multi-step grid (exercises batch
    # padding and the "parallel" grid axis).
    B2 = 52
    ka2, kb2 = jax.random.split(jax.random.PRNGKey(1))
    inputA2 = jax.random.normal(ka2, (B2, 5), jnp.float32)
    inputB2 = jax.random.normal(kb2, (B2, 6), jnp.float32)

    pA2, out2 = purchase_vertical_forward(inputA2, inputB2, params, tb=16)
    pA2 = jax.block_until_ready(pA2)
    out2 = jax.block_until_ready(out2)

    ref_pA2, ref_out2 = reference_forward(inputA2, inputB2, params)
    assert pA2.shape == (B2, 32) and out2.shape == (B2, 2)
    assert jnp.allclose(pA2, ref_pA2, atol=1e-5, rtol=1e-5)
    assert jnp.allclose(out2, ref_out2, atol=1e-5, rtol=1e-5)

    print("KERNEL_OK")
</pallas_src>

<mosaic_0001>
module attributes {stable_mosaic.version = 11 : i64} {
  func.func @_vertical_kernel(%arg0: i32, %arg1: memref<16x12xf32, #tpu.memory_space<vmem>>, %arg2: memref<12x65xf32, #tpu.memory_space<vmem>>, %arg3: memref<65x33xf32, #tpu.memory_space<vmem>>, %arg4: memref<33x96xf32, #tpu.memory_space<vmem>>, %arg5: memref<16x128xf32, #tpu.memory_space<vmem>>) attributes {dimension_semantics = [#tpu.dimension_semantics<parallel>], iteration_bounds = array<i64: 1>, scalar_prefetch = 0 : i64, scratch_operands = 0 : i64, tpu.core_type = #tpu.core_type<tc>, window_params = [{transform_indices = @transform_0, window_bounds = array<i64: 16, 12>}, {pipeline_mode = #tpu.pipeline_mode<synchronous>, transform_indices = @transform_1, window_bounds = array<i64: 12, 65>}, {pipeline_mode = #tpu.pipeline_mode<synchronous>, transform_indices = @transform_2, window_bounds = array<i64: 65, 33>}, {pipeline_mode = #tpu.pipeline_mode<synchronous>, transform_indices = @transform_3, window_bounds = array<i64: 33, 96>}, {transform_indices = @transform_4, window_bounds = array<i64: 16, 128>}]} {
    %c0 = arith.constant 0 : index
    %c0_0 = arith.constant 0 : index
    %0 = vector.load %arg1[%c0, %c0_0] : memref<16x12xf32, #tpu.memory_space<vmem>>, vector<16x12xf32>
    %c0_1 = arith.constant 0 : index
    %c0_2 = arith.constant 0 : index
    %1 = vector.load %arg2[%c0_1, %c0_2] : memref<12x65xf32, #tpu.memory_space<vmem>>, vector<12x65xf32>
    %cst = arith.constant dense<0.000000e+00> : vector<16x65xf32>
    %2 = tpu.matmul %0, %1, %cst {dimension_numbers = #tpu.dot_dimension_numbers<[1], [0], [0], [1], [0, 0, 1, 1], [], []>} : vector<16x12xf32>, vector<12x65xf32>, vector<16x65xf32> -> vector<16x65xf32>
    %cst_3 = arith.constant 0.000000e+00 : f32
    %3 = vector.broadcast %cst_3 : f32 to vector<16x65xf32>
    %4 = arith.maximumf %2, %3 : vector<16x65xf32>
    %c0_4 = arith.constant 0 : index
    %c0_5 = arith.constant 0 : index
    %5 = vector.load %arg3[%c0_4, %c0_5] : memref<65x33xf32, #tpu.memory_space<vmem>>, vector<65x33xf32>
    %cst_6 = arith.constant dense<0.000000e+00> : vector<16x33xf32>
    %6 = tpu.matmul %4, %5, %cst_6 {dimension_numbers = #tpu.dot_dimension_numbers<[1], [0], [0], [1], [0, 0, 1, 1], [], []>} : vector<16x65xf32>, vector<65x33xf32>, vector<16x33xf32> -> vector<16x33xf32>
    %cst_7 = arith.constant 0.000000e+00 : f32
    %7 = vector.broadcast %cst_7 : f32 to vector<16x33xf32>
    %8 = arith.maximumf %6, %7 : vector<16x33xf32>
    %c0_8 = arith.constant 0 : index
    %c0_9 = arith.constant 0 : index
    %9 = vector.load %arg4[%c0_8, %c0_9] : memref<33x96xf32, #tpu.memory_space<vmem>>, vector<33x96xf32>
    %cst_10 = arith.constant dense<0.000000e+00> : vector<16x96xf32>
    %10 = tpu.matmul %8, %9, %cst_10 {dimension_numbers = #tpu.dot_dimension_numbers<[1], [0], [0], [1], [0, 0, 1, 1], [], []>} : vector<16x33xf32>, vector<33x96xf32>, vector<16x96xf32> -> vector<16x96xf32>
    %11 = vector.extract_strided_slice %4 {offsets = [0, 0], sizes = [16, 32], strides = [1, 1]} : vector<16x65xf32> to vector<16x32xf32>
    %12 = tpu.concatenate %11, %10 in 1 : vector<16x32xf32>, vector<16x96xf32> -> vector<16x128xf32>
    %c0_11 = arith.constant 0 : index
    %c0_12 = arith.constant 0 : index
    %13 = vector.load %arg5[%c0_11, %c0_12] : memref<16x128xf32, #tpu.memory_space<vmem>>, vector<16x128xf32>
    tpu.vector_store %arg5[%c0_11, %c0_12], %12 {strides = array<i32>} : memref<16x128xf32, #tpu.memory_space<vmem>>, vector<16x128xf32>,
    return
  }
  func.func @transform_0(%arg0: i32) -> (i32, i32) {
    %c0_i32 = arith.constant 0 : i32
    %c0_i32_0 = arith.constant 0 : i32
    return %arg0, %c0_i32 : i32, i32
  }
  func.func @transform_1(%arg0: i32) -> (i32, i32) {
    %c0_i32 = arith.constant 0 : i32
    %c0_i32_0 = arith.constant 0 : i32
    %c0_i32_1 = arith.constant 0 : i32
    return %c0_i32, %c0_i32_0 : i32, i32
  }
  func.func @transform_2(%arg0: i32) -> (i32, i32) {
    %c0_i32 = arith.constant 0 : i32
    %c0_i32_0 = arith.constant 0 : i32
    %c0_i32_1 = arith.constant 0 : i32
    return %c0_i32, %c0_i32_0 : i32, i32
  }
  func.func @transform_3(%arg0: i32) -> (i32, i32) {
    %c0_i32 = arith.constant 0 : i32
    %c0_i32_0 = arith.constant 0 : i32
    %c0_i32_1 = arith.constant 0 : i32
    return %c0_i32, %c0_i32_0 : i32, i32
  }
  func.func @transform_4(%arg0: i32) -> (i32, i32) {
    %c0_i32 = arith.constant 0 : i32
    %c0_i32_0 = arith.constant 0 : i32
    return %arg0, %c0_i32 : i32, i32
  }
}

</mosaic_0001>

<llo_original>
// kernel: tpu_custom_call.1
$region0: #{tpu_custom_call.1}
  #allocation0 [shape = 'u32[]', space=smem, size = 0x4, offset = 0x4, fixed_abs, tag = 'smem constant byte address 0x4 - core index']
  #allocation1 [shape = 'u32[72,128]{1,0:T(1,128)}', space=vmem, size = 0x9000, scoped, tag = 'internal scratch']
  %s0 = inlined_call_operand.vmem [shape: f32[16,12], index: 0, kind: input, shape index: {}]
  %s1 = inlined_call_operand.vmem [shape: f32[12,65], index: 1, kind: input, shape index: {}]
  %s2 = inlined_call_operand.vmem [shape: f32[65,33], index: 2, kind: input, shape index: {}]
  %s3 = inlined_call_operand.vmem [shape: f32[33,96], index: 3, kind: input, shape index: {}]
  %s4 = inlined_call_operand.hbm [shape: f32[16,128], index: 4, kind: output, shape index: {}]
  %s5 = sld [smem:[#allocation0]]
  $region26: #{tpu_custom_call.1} parent=0
    _
  %s7 = ssub.s32 1, %s5
  %s8 = scalar_select 0, %s7, %s5
  $region1: #{tpu_custom_call.1} parent=0
    #allocation2 [shape = 'u8[8192]{0}', space=vmem, size = 0x2000, scoped, tag = 'output window, operand 0, single buffered']
    #allocation3 [shape = 's32[1]{0}', space=sflag, size = 0x4, scoped, tag = 'scoped memory for tpu_custom_call.1']
    %9 = vsyncpa [#allocation3], 0
    // Predicated region
    $region2: #{tpu_custom_call.1} parent=1 // pred_check
      _
    $region3: #{tpu_custom_call.1} parent=1 // pred_check_branch
      %11 = sbr.rel (0) target = $region5
    $region4: #{tpu_custom_call.1} parent=1 // pred_region
      _
    $region5: #{tpu_custom_call.1} parent=1 // pred_fallthru
      _
    // Predicated region
    $region6: #{tpu_custom_call.1} parent=1 // pred_check
      _
    $region7: #{tpu_custom_call.1} parent=1 // pred_check_branch
      %13 = sbr.rel (0) target = $region9
    $region8: #{tpu_custom_call.1} parent=1 // pred_region
      _
    $region9: #{tpu_custom_call.1} parent=1 // pred_fallthru
      _
    // Predicated region
    $region10: #{tpu_custom_call.1} parent=1 // pred_check
      _
    $region11: #{tpu_custom_call.1} parent=1 // pred_check_branch
      %15 = sbr.rel (0) target = $region13
    $region12: #{tpu_custom_call.1} parent=1 // pred_region
      _
    $region13: #{tpu_custom_call.1} parent=1 // pred_fallthru
      _
    // Predicated region
    $region14: #{tpu_custom_call.1} parent=1 // pred_check
      _
    $region15: #{tpu_custom_call.1} parent=1 // pred_check_branch
      %17 = sbr.rel (0) target = $region17
    $region16: #{tpu_custom_call.1} parent=1 // pred_region
      _
    $region17: #{tpu_custom_call.1} parent=1 // pred_fallthru
      _
    %v18 = vld [vmem:[%s0] sm:$0xff]
    %v19 = vld [vmem:[%s0 + $0x8] sm:$0xff]
    %v20 = vld [vmem:[%s1] sm:$0xff]
    %v21 = vld [vmem:[%s1 + $0x8] sm:$0xf]
    %vm22 = vcmask 97280
    %v24 = vsel %vm22, %v18, 0
    %v27 = vsel %vm22, %v19, 0
    %vm29 = vcmask 1043456
    %v31 = vsel %vm29, %v21, 0
    %33 = vmatpush.msra.mxu0 0.0
    %34 = vmatpush.msra.mxu0 0.0
    %35 = vmatpush.msra.mxu0 0.0
    %36 = vmatpush.msra.mxu0 0.0
    %37 = vmatpush.msra.mxu0 0.0
    %38 = vmatpush.msra.mxu0 0.0
    %39 = vmatpush.msra.mxu0 0.0
    %40 = vmatpush.msra.mxu0 0.0
    %41 = vmatpush.msra.mxu0 0.0
    %42 = vmatpush.msra.mxu0 0.0
    %43 = vmatpush.msra.mxu0 0.0
    %44 = vmatpush.msra.mxu0 0.0
    %45 = vmatpush.msra.mxu0 0.0
    %46 = vmatpush.msra.mxu0 0.0
    %47 = vmatpush.msra.mxu0 %v31
    %48 = vmatpush.msra.mxu0 %v20
    %49 = vmatmul.f32.gmra.mxu0 %v24
    %v50 = vpop.f32.mrf.mxu0
    %v51 = vadd.f32 0.0, %v50
    %52 = vmatmul.f32.gmra.mxu0 %v27
    %v53 = vpop.f32.mrf.mxu0
    %v54 = vadd.f32 0.0, %v53
    %55 = vdwg.mxu0
    %v56 = vmax.f32 %v51, 0.0
    %v57 = vmax.f32 %v54, 0.0
    %v58 = vld [vmem:[%s2] sm:$0xff]
    %v59 = vld [vmem:[%s2 + $0x8] sm:$0xff]
    %v60 = vld [vmem:[%s2 + $0x10] sm:$0xff]
    %v61 = vld [vmem:[%s2 + $0x18] sm:$0xff]
    %v62 = vld [vmem:[%s2 + $0x20] sm:$0xff]
    %v63 = vld [vmem:[%s2 + $0x28] sm:$0xff]
    %v64 = vld [vmem:[%s2 + $0x30] sm:$0xff]
    %v65 = vld [vmem:[%s2 + $0x38] sm:$0xff]
    %v66 = vld [vmem:[%s2 + $0x40] sm:$0x1]
    %vm67 = vcmask 531456
    %v69 = vsel %vm67, %v56, 0
    %v72 = vsel %vm67, %v57, 0
    %vm74 = vcmask 1040384
    %v76 = vsel %vm74, %v66, 0
    %78 = vmatpush.msra.mxu0 0.0
    %79 = vmatpush.msra.mxu0 0.0
    %80 = vmatpush.msra.mxu0 0.0
    %81 = vmatpush.msra.mxu0 0.0
    %82 = vmatpush.msra.mxu0 0.0
    %83 = vmatpush.msra.mxu0 0.0
    %84 = vmatpush.msra.mxu0 0.0
    %85 = vmatpush.msra.mxu0 %v76
    %86 = vmatpush.msra.mxu0 %v65
    %87 = vmatpush.msra.mxu0 %v64
    %88 = vmatpush.msra.mxu0 %v63
    %89 = vmatpush.msra.mxu0 %v62
    %90 = vmatpush.msra.mxu0 %v61
    %91 = vmatpush.msra.mxu0 %v60
    %92 = vmatpush.msra.mxu0 %v59
    %93 = vmatpush.msra.mxu0 %v58
    %94 = vmatmul.f32.gmra.mxu0 %v69
    %v95 = vpop.f32.mrf.mxu0
    %v96 = vadd.f32 0.0, %v95
    %97 = vmatmul.f32.gmra.mxu0 %v72
    %v98 = vpop.f32.mrf.mxu0
    %v99 = vadd.f32 0.0, %v98
    %100 = vdwg.mxu0
    %v101 = vmax.f32 %v96, 0.0
    %v102 = vmax.f32 %v99, 0.0
    %v103 = vld [vmem:[%s3] sm:$0xff]
    %v104 = vld [vmem:[%s3 + $0x8] sm:$0xff]
    %v105 = vld [vmem:[%s3 + $0x10] sm:$0xff]
    %v106 = vld [vmem:[%s3 + $0x18] sm:$0xff]
    %v107 = vld [vmem:[%s3 + $0x20] sm:$0x1]
    %vm108 = vcmask 269312
    %v110 = vsel %vm108, %v101, 0
    %v113 = vsel %vm108, %v102, 0
    %v116 = vsel %vm74, %v107, 0
    %118 = vmatpush.msra.mxu0 0.0
    %119 = vmatpush.msra.mxu0 0.0
    %120 = vmatpush.msra.mxu0 0.0
    %121 = vmatpush.msra.mxu0 0.0
    %122 = vmatpush.msra.mxu0 0.0
    %123 = vmatpush.msra.mxu0 0.0
    %124 = vmatpush.msra.mxu0 0.0
    %125 = vmatpush.msra.mxu0 0.0
    %126 = vmatpush.msra.mxu0 0.0
    %127 = vmatpush.msra.mxu0 0.0
    %128 = vmatpush.msra.mxu0 0.0
    %129 = vmatpush.msra.mxu0 %v116
    %130 = vmatpush.msra.mxu0 %v106
    %131 = vmatpush.msra.mxu0 %v105
    %132 = vmatpush.msra.mxu0 %v104
    %133 = vmatpush.msra.mxu0 %v103
    %134 = vmatmul.f32.gmra.mxu0 %v110
    %v135 = vpop.f32.mrf.mxu0
    %v136 = vadd.f32 0.0, %v135
    %137 = vmatmul.f32.gmra.mxu0 %v113
    %v138 = vpop.f32.mrf.mxu0
    %v139 = vadd.f32 0.0, %v138
    %140 = vdwg.mxu0
    %143 = vrot.lane.b32.xlu0 %v136, 32
    %v144 = vpop.permute.xlu0 %143
    %145 = vrot.lane.b32.xlu0 %v139, 32
    %v146 = vpop.permute.xlu0 %145
    %vm149 = vcmask 261120
    %v150 = vsel %vm149, %v56, %v144
    %v151 = vsel %vm149, %v57, %v146
    %152 = vst [vmem:[#allocation2] sm:$0xff] %v150
    %153 = vst [vmem:[#allocation2 + $0x8] sm:$0xff] %v151
    // Predicated region
    $region18: #{tpu_custom_call.1} parent=1 // pred_check
      _
    $region19: #{tpu_custom_call.1} parent=1 // pred_check_branch
      %155 = sbr.rel (0) target = $region21
    $region20: #{tpu_custom_call.1} parent=1 // pred_region
      %157 = vsyncadd [#allocation3], 0
      %s158 = sshll.u32 [#allocation2], 4
      %s159 = int_to_ptr.vmem [resolvable:$true] %s158
      %s160 = sshll.u32 %s4, 4
      %s161 = int_to_ptr.hbm [resolvable:$true] %s160
      %166 = dma.vmem_to_hbm [thread:$0]  %s159, 256, %s161, [#allocation3], 128, 128, 8
    $region21: #{tpu_custom_call.1} parent=1 // pred_fallthru
      _
    // Predicated region
    $region22: #{tpu_custom_call.1} parent=1 // pred_check
      _
    $region23: #{tpu_custom_call.1} parent=1 // pred_check_branch
      %168 = sbr.rel (0) target = $region25
    $region24: #{tpu_custom_call.1} parent=1 // pred_region
      %170 = dma.done [#allocation3], 256
    $region25: #{tpu_custom_call.1} parent=1 // pred_fallthru
      _
    %171 = vsyncpa [#allocation3], 1

</llo_original>
